<compile_context>
chip_gen: v6e
topology: v6e:2x2x1
jax: 0.10.0
libtpu: 0.0.40
codegen_flags: <defaults>
</compile_context>

<pallas_src>
import math

import jax
import jax.numpy as jnp
from jax.experimental import pallas as pl
from jax.experimental.pallas import tpu as pltpu


_LANE_CANDIDATES = (2048, 1024, 512, 256, 128)   # lane-dense flat widths to try
_TARGET_BLOCK_BYTES = 2 * 1024 * 1024            # ~2 MiB blocks: HBM-roofline on
                                                 # v5e/v6e, VMEM-safe on v7x


def _copy_kernel(x_ref, o_ref):
    # Pure data movement: one lane-dense (Rb, Wf) slab per grid step.
    o_ref[...] = x_ref[...]


def _pick_row_block(R, max_rb):
    """Row-block size: multiple of 32 (then 16, 8) dividing R, <= max_rb."""
    if R <= max_rb:
        return R                       # whole row axis: full-dim block, always legal
    for base in (32, 16, 8):
        cand = (max_rb // base) * base
        while cand >= base:
            if R % cand == 0:
                return cand
            cand -= base
    # Last resort (only for pathological non-power-of-two row counts, never hit
    # by this module's power-of-two activations): single full-axis block.
    return R


def _flat_tiled_copy(x_flat):
    """x_flat: (R, Wf) row-major slab -> identical (R, Wf) slab via Pallas."""
    R, Wf = x_flat.shape
    itemsize = jnp.dtype(x_flat.dtype).itemsize
    max_rb = max(1, _TARGET_BLOCK_BYTES // (Wf * itemsize))
    Rb = _pick_row_block(R, max_rb)
    grid = (R // Rb,)
    return pl.pallas_call(
        _copy_kernel,
        out_shape=jax.ShapeDtypeStruct((R, Wf), x_flat.dtype),
        grid=grid,
        in_specs=[pl.BlockSpec((Rb, Wf), lambda r: (r, 0))],
        out_specs=pl.BlockSpec((Rb, Wf), lambda r: (r, 0)),
        compiler_params=pltpu.CompilerParams(
            dimension_semantics=("parallel",),   # megacore-shards rows on v7x
        ),
    )(x_flat)


def _materialize_view(x, target):
    """Materialize x viewed as `target` via a single lane-dense tiled copy."""
    total = math.prod(target)
    # Pick a lane-dense flat width (multiple of 128) that divides the buffer.
    Wf = None
    for w in _LANE_CANDIDATES:
        if total % w == 0:
            Wf = w
            break
    if Wf is None:
        # Cannot lane-densify exactly; fall back to the target's last dim
        # (always divides total; block then uses the full-array lane extent).
        Wf = target[-1]
    Rf = total // Wf
    x_flat = x.reshape(Rf, Wf)          # metadata-only row-major reshape
    y_flat = _flat_tiled_copy(x_flat)   # the actual data movement
    return y_flat.reshape(target)       # metadata-only reshape back


def view_pallas(x, C, H=None, W=None):
    """Pallas equivalent of View(C, H, W).forward(x)."""
    B = x.shape[0]
    n = math.prod(x.shape[1:]) if x.ndim > 1 else 1

    if H is None and W is None:
        target = (B, C)
    elif W is None:
        target = (B, C, H)
    else:
        target = (B, C, H, W)

    assert n == math.prod(target[1:]), f"cannot view {x.shape} as {target}"
    return _materialize_view(x, target)


if __name__ == "__main__":
    # View(C=4, H=16, W=16) applied to a flat activation (B, C*H*W),
    # e.g. the output of a fully-connected layer feeding a decoder.
    B, C, H, W = 2, 4, 16, 16
    key = jax.random.PRNGKey(0)
    x = jax.random.normal(key, (B, C * H * W), dtype=jnp.float32)

    # 4-D branch (the main decoder path).
    y = view_pallas(x, C, H, W)
    y = jax.block_until_ready(y)
    ref = x.reshape(B, C, H, W)  # torch .view == row-major reshape
    assert y.shape == (B, C, H, W)
    assert y.dtype == x.dtype
    assert bool(jnp.array_equal(y, ref)), "Pallas view output mismatch (4D)"

    # (B, C) branch: View(C=1024, None, None).
    y2 = jax.block_until_ready(view_pallas(x, C * H * W))
    assert bool(jnp.array_equal(y2, x.reshape(B, C * H * W))), "view mismatch (2D)"

    # (B, C, H) branch: View(C=64, H=16, None).
    y3 = jax.block_until_ready(view_pallas(x, 64, 16))
    assert bool(jnp.array_equal(y3, x.reshape(B, 64, 16))), "view mismatch (3D)"

    print("KERNEL_OK")
</pallas_src>

<mosaic_0001>
module attributes {stable_mosaic.version = 11 : i64} {
  func.func @_copy_kernel(%arg0: i32, %arg1: memref<1x2048xf32, #tpu.memory_space<vmem>>, %arg2: memref<1x2048xf32, #tpu.memory_space<vmem>>) attributes {dimension_semantics = [#tpu.dimension_semantics<parallel>], iteration_bounds = array<i64: 1>, scalar_prefetch = 0 : i64, scratch_operands = 0 : i64, tpu.core_type = #tpu.core_type<tc>, window_params = [{transform_indices = @transform_0, window_bounds = array<i64: 1, 2048>}, {transform_indices = @transform_1, window_bounds = array<i64: 1, 2048>}]} {
    %c0 = arith.constant 0 : index
    %c0_0 = arith.constant 0 : index
    %0 = vector.load %arg1[%c0, %c0_0] : memref<1x2048xf32, #tpu.memory_space<vmem>>, vector<1x2048xf32>
    %c0_1 = arith.constant 0 : index
    %c0_2 = arith.constant 0 : index
    %1 = vector.load %arg2[%c0_1, %c0_2] : memref<1x2048xf32, #tpu.memory_space<vmem>>, vector<1x2048xf32>
    tpu.vector_store %arg2[%c0_1, %c0_2], %0 {strides = array<i32>} : memref<1x2048xf32, #tpu.memory_space<vmem>>, vector<1x2048xf32>,
    return
  }
  func.func @transform_0(%arg0: i32) -> (i32, i32) {
    %c0_i32 = arith.constant 0 : i32
    %c0_i32_0 = arith.constant 0 : i32
    return %arg0, %c0_i32 : i32, i32
  }
  func.func @transform_1(%arg0: i32) -> (i32, i32) {
    %c0_i32 = arith.constant 0 : i32
    %c0_i32_0 = arith.constant 0 : i32
    return %arg0, %c0_i32 : i32, i32
  }
}

</mosaic_0001>

<llo_original>
// kernel: tpu_custom_call.1
$region0: #{tpu_custom_call.1}
  #allocation0 [shape = 'u32[]', space=smem, size = 0x4, offset = 0x4, fixed_abs, tag = 'smem constant byte address 0x4 - core index']
  #allocation1 [shape = 'u32[144,128]{1,0:T(1,128)}', space=vmem, size = 0x12000, scoped, tag = 'internal scratch']
  %s0 = inlined_call_operand.hbm [shape: f32[1,2048], index: 0, kind: input, shape index: {}]
  %s1 = inlined_call_operand.hbm [shape: f32[1,2048], index: 1, kind: output, shape index: {}]
  %s2 = sld [smem:[#allocation0]]
  $region18: #{tpu_custom_call.1} parent=0
    _
  %s4 = ssub.s32 1, %s2
  %s5 = scalar_select 0, %s4, %s2
  $region1: #{tpu_custom_call.1} parent=0
    #allocation2 [shape = 'u8[8192]{0}', space=vmem, size = 0x2000, scoped, tag = 'input window, operand 0, single buffered']
    #allocation3 [shape = 's32[1]{0}', space=sflag, size = 0x4, scoped, tag = 'scoped memory for tpu_custom_call.1']
    #allocation4 [shape = 's32[1]{0}', space=sflag, size = 0x4, scoped, tag = 'scoped memory for tpu_custom_call.1']
    #allocation5 [shape = 'u8[8192]{0}', space=vmem, size = 0x2000, scoped, tag = 'output window, operand 0, single buffered']
    %6 = vsyncpa [#allocation3], 0
    %7 = vsyncpa [#allocation4], 0
    // Predicated region
    $region2: #{tpu_custom_call.1} parent=1 // pred_check
      _
    $region3: #{tpu_custom_call.1} parent=1 // pred_check_branch
      %9 = sbr.rel (0) target = $region5
    $region4: #{tpu_custom_call.1} parent=1 // pred_region
      %s11 = ssub.s32 256, 256
      %12 = vsyncadd [#allocation3], %s11
      %s14 = sshll.u32 [#allocation2], 4
      %s15 = int_to_ptr.vmem [resolvable:$true] %s14
      %17 = dma.hbm_to_vmem [thread:$0]  %s0, 256, %s15, [#allocation3]
    $region5: #{tpu_custom_call.1} parent=1 // pred_fallthru
      _
    // Predicated region
    $region6: #{tpu_custom_call.1} parent=1 // pred_check
      _
    $region7: #{tpu_custom_call.1} parent=1 // pred_check_branch
      %19 = sbr.rel (0) target = $region9
    $region8: #{tpu_custom_call.1} parent=1 // pred_region
      %20 = dma.done [#allocation3], 256
    $region9: #{tpu_custom_call.1} parent=1 // pred_fallthru
      _
    %v21 = vld [vmem:[#allocation2] sm:$0xff]
    %v22 = vld [vmem:[#allocation2 + $0x8] sm:$0xff]
    %23 = vst [vmem:[#allocation5] sm:$0xff] %v21
    %24 = vst [vmem:[#allocation5 + $0x8] sm:$0xff] %v22
    // Predicated region
    $region10: #{tpu_custom_call.1} parent=1 // pred_check
      _
    $region11: #{tpu_custom_call.1} parent=1 // pred_check_branch
      %26 = sbr.rel (0) target = $region13
    $region12: #{tpu_custom_call.1} parent=1 // pred_region
      %s28 = ssub.s32 256, 256
      %29 = vsyncadd [#allocation4], %s28
      %s31 = sshll.u32 [#allocation5], 4
      %s32 = int_to_ptr.vmem [resolvable:$true] %s31
      %34 = dma.vmem_to_hbm [thread:$0]  %s32, 256, %s1, [#allocation4]
    $region13: #{tpu_custom_call.1} parent=1 // pred_fallthru
      _
    // Predicated region
    $region14: #{tpu_custom_call.1} parent=1 // pred_check
      _
    $region15: #{tpu_custom_call.1} parent=1 // pred_check_branch
      %36 = sbr.rel (0) target = $region17
    $region16: #{tpu_custom_call.1} parent=1 // pred_region
      %37 = dma.done [#allocation4], 256
    $region17: #{tpu_custom_call.1} parent=1 // pred_fallthru
      _
    %38 = vsyncpa [#allocation3], 1
    %39 = vsyncpa [#allocation4], 1

</llo_original>
